<compile_context>
chip_gen: v6e
topology: v6e:2x2x1
jax: 0.10.0
libtpu: 0.0.40
codegen_flags: <defaults>
</compile_context>

<pallas_src>
import functools
import math

import jax
import jax.numpy as jnp
from jax.experimental import pallas as pl
from jax.experimental.pallas import tpu as pltpu

BN_EPS = 1e-5
LANE = 128  # TPU lane width; feature axes are zero-padded to this width.


# ----------------------------------------------------------------------------
# Kernel
# ----------------------------------------------------------------------------
def qnet_kernel(x_ref, p_ref, out_ref, *, num_actions):
    # --- unpack the single packed parameter buffer (static, 8-row aligned) ---
    vecs = p_ref[pl.ds(0, 8), :]               # (8, 128): gamma,beta,b1,b2,b3,0
    gamma = vecs[0:1, :]
    beta = vecs[1:2, :]
    b1 = vecs[2:3, :]
    b2 = vecs[3:4, :]
    b3 = vecs[4:5, :]
    w1 = p_ref[pl.ds(8, LANE), :]              # (128, 128) zero-padded
    w2 = p_ref[pl.ds(8 + LANE, LANE), :]       # (128, 128) zero-padded
    w3 = p_ref[pl.ds(8 + 2 * LANE, LANE), :]   # (128, 128) zero-padded

    x = x_ref[...]                             # (B, 128); real features [:, :D]

    # --- BatchNorm1d, training mode (biased batch stats), fused scale/shift --
    mean = jnp.mean(x, axis=0, keepdims=True)
    xm = x - mean
    var = jnp.mean(xm * xm, axis=0, keepdims=True)
    scale = gamma * jax.lax.rsqrt(var + BN_EPS)   # padded lanes: gamma=0 -> 0
    xn = xm * scale + beta

    # --- MLP: fc1+ReLU, fc2+ReLU, fc3 (full 128-lane MXU matmuls) ------------
    h1 = jnp.maximum(jnp.dot(xn, w1, preferred_element_type=jnp.float32) + b1, 0.0)
    h2 = jnp.maximum(jnp.dot(h1, w2, preferred_element_type=jnp.float32) + b2, 0.0)
    logits = jnp.dot(h2, w3, preferred_element_type=jnp.float32) + b3

    # --- Softmax over the first num_actions lanes (padded lanes masked out) --
    lane = jax.lax.broadcasted_iota(jnp.int32, logits.shape, 1)
    logits = jnp.where(lane < num_actions, logits, jnp.float32(-1e30))
    m = jnp.max(logits, axis=-1, keepdims=True)
    e = jnp.exp(logits - m)
    denom = jnp.sum(e, axis=-1, keepdims=True)
    # EUP approx reciprocal + one Newton-Raphson step (keeps rel. err ~1e-7).
    r = pl.reciprocal(denom, approx=True)
    r = r * (2.0 - denom * r)

    out_ref[...] = e * r                       # (B, 128) lane-dense store


# ----------------------------------------------------------------------------
# Wrapper
# ----------------------------------------------------------------------------
def pack_params(params):
    """Pack gamma/beta/biases (rows 0..4) and the three weights into (392,128)."""
    def vec(v):  # (1, n) -> (1, 128)
        return jnp.pad(v, ((0, 0), (0, LANE - v.shape[1])))

    def mat(w):  # (in, out) -> (128, 128)
        return jnp.pad(w, ((0, LANE - w.shape[0]), (0, LANE - w.shape[1])))

    vec_block = jnp.concatenate(
        [vec(params["gamma"]), vec(params["beta"]),
         vec(params["fc1_b"]), vec(params["fc2_b"]), vec(params["fc3_b"]),
         jnp.zeros((3, LANE), jnp.float32)], axis=0)            # (8, 128)
    return jnp.concatenate(
        [vec_block, mat(params["fc1_w"]), mat(params["fc2_w"]),
         mat(params["fc3_w"])], axis=0)                         # (392, 128)


def qnetwork_forward(s, params, num_actions):
    B = s.shape[0]
    x = s.reshape(B, -1).astype(jnp.float32)
    D = x.shape[1]
    x_pad = jnp.pad(x, ((0, 0), (0, LANE - D)))     # lane-dense input tile
    packed = pack_params(params)                    # single parameter DMA

    H1 = params["fc1_w"].shape[1]
    H2 = params["fc2_w"].shape[1]
    flops = 2 * B * (D * H1 + H1 * H2 + H2 * num_actions)
    bytes_accessed = 4 * (x_pad.size + packed.size + B * LANE)

    vmem = pl.BlockSpec(memory_space=pltpu.MemorySpace.VMEM)
    out = pl.pallas_call(
        functools.partial(qnet_kernel, num_actions=num_actions),
        out_shape=jax.ShapeDtypeStruct((B, LANE), jnp.float32),
        in_specs=[vmem, vmem],
        out_specs=vmem,
        cost_estimate=pl.CostEstimate(
            flops=flops,
            transcendentals=B * num_actions,
            bytes_accessed=bytes_accessed),
    )(x_pad, packed)
    return out[:, :num_actions]


# ----------------------------------------------------------------------------
# Params / reference
# ----------------------------------------------------------------------------
def make_params(key, state_dim, mlp_layers, num_actions):
    """Deterministic PyTorch-default-style init (uniform +-1/sqrt(fan_in))."""
    dims = [state_dim] + list(mlp_layers) + [num_actions]
    params = {
        "gamma": jnp.ones((1, state_dim), jnp.float32),
        "beta": jnp.zeros((1, state_dim), jnp.float32),
    }
    for i, name in enumerate(["fc1", "fc2", "fc3"]):
        fan_in, fan_out = dims[i], dims[i + 1]
        key, kw, kb = jax.random.split(key, 3)
        bound = 1.0 / math.sqrt(fan_in)
        params[f"{name}_w"] = jax.random.uniform(   # stored transposed: (in, out)
            kw, (fan_in, fan_out), jnp.float32, -bound, bound)
        params[f"{name}_b"] = jax.random.uniform(
            kb, (1, fan_out), jnp.float32, -bound, bound)
    return params


def reference_forward(s, params):
    """Pure-JAX reference mirroring the PyTorch module (training-mode BN)."""
    B = s.shape[0]
    x = s.reshape(B, -1).astype(jnp.float32)
    mean = jnp.mean(x, axis=0, keepdims=True)
    var = jnp.mean((x - mean) ** 2, axis=0, keepdims=True)
    xn = (x - mean) / jnp.sqrt(var + BN_EPS) * params["gamma"] + params["beta"]
    h1 = jax.nn.relu(xn @ params["fc1_w"] + params["fc1_b"])
    h2 = jax.nn.relu(h1 @ params["fc2_w"] + params["fc2_b"])
    return jax.nn.softmax(h2 @ params["fc3_w"] + params["fc3_b"], axis=-1)


# ----------------------------------------------------------------------------
if __name__ == "__main__":
    num_actions = 2
    state_shape = (4, 4)          # flattened dim D = 16
    mlp_layers = [32, 32]
    B = 8

    key = jax.random.PRNGKey(0)
    key, ks, kp = jax.random.split(key, 3)
    s = jax.random.normal(ks, (B,) + state_shape, jnp.float32)

    state_dim = math.prod(state_shape)
    params = make_params(kp, state_dim, mlp_layers, num_actions)

    fwd = jax.jit(lambda s_, p_: qnetwork_forward(s_, p_, num_actions))
    out = jax.block_until_ready(fwd(s, params))

    ref = reference_forward(s, params)
    assert out.shape == (B, num_actions)
    assert jnp.allclose(out, ref, atol=1e-5, rtol=1e-5), (out, ref)
    # softmax rows must each sum to 1
    assert jnp.allclose(jnp.sum(out, axis=-1), 1.0, atol=1e-5)

    print("KERNEL_OK")
</pallas_src>

<mosaic_0001>
module attributes {stable_mosaic.version = 11 : i64} {
  func.func @qnet_kernel(%arg0: memref<8x128xf32, #tpu.memory_space<vmem>>, %arg1: memref<392x128xf32, #tpu.memory_space<vmem>>, %arg2: memref<8x128xf32, #tpu.memory_space<vmem>>) attributes {dimension_semantics = [], scalar_prefetch = 0 : i64, scratch_operands = 0 : i64, tpu.core_type = #tpu.core_type<tc>} {
    %c0 = arith.constant 0 : index
    %c0_0 = arith.constant 0 : index
    %0 = vector.load %arg1[%c0, %c0_0] : memref<392x128xf32, #tpu.memory_space<vmem>>, vector<8x128xf32>
    %1 = vector.extract_strided_slice %0 {offsets = [0, 0], sizes = [1, 128], strides = [1, 1]} : vector<8x128xf32> to vector<1x128xf32>
    %2 = vector.extract_strided_slice %0 {offsets = [1, 0], sizes = [1, 128], strides = [1, 1]} : vector<8x128xf32> to vector<1x128xf32>
    %3 = vector.extract_strided_slice %0 {offsets = [2, 0], sizes = [1, 128], strides = [1, 1]} : vector<8x128xf32> to vector<1x128xf32>
    %4 = vector.extract_strided_slice %0 {offsets = [3, 0], sizes = [1, 128], strides = [1, 1]} : vector<8x128xf32> to vector<1x128xf32>
    %5 = vector.extract_strided_slice %0 {offsets = [4, 0], sizes = [1, 128], strides = [1, 1]} : vector<8x128xf32> to vector<1x128xf32>
    %c8 = arith.constant 8 : index
    %c0_1 = arith.constant 0 : index
    %6 = vector.load %arg1[%c8, %c0_1] : memref<392x128xf32, #tpu.memory_space<vmem>>, vector<128x128xf32>
    %c136 = arith.constant 136 : index
    %c0_2 = arith.constant 0 : index
    %7 = vector.load %arg1[%c136, %c0_2] : memref<392x128xf32, #tpu.memory_space<vmem>>, vector<128x128xf32>
    %c264 = arith.constant 264 : index
    %c0_3 = arith.constant 0 : index
    %8 = vector.load %arg1[%c264, %c0_3] : memref<392x128xf32, #tpu.memory_space<vmem>>, vector<128x128xf32>
    %c0_4 = arith.constant 0 : index
    %c0_5 = arith.constant 0 : index
    %9 = vector.load %arg0[%c0_4, %c0_5] : memref<8x128xf32, #tpu.memory_space<vmem>>, vector<8x128xf32>
    %cst = arith.constant dense<0.000000e+00> : vector<128xf32>
    %10 = vector.multi_reduction <add>, %9, %cst [0] : vector<8x128xf32> to vector<128xf32>
    %11 = vector.shape_cast %10 : vector<128xf32> to vector<1x128xf32>
    %cst_6 = arith.constant 8.000000e+00 : f32
    %12 = vector.broadcast %cst_6 : f32 to vector<1x128xf32>
    %13 = arith.divf %11, %12 : vector<1x128xf32>
    %14 = vector.broadcast %13 : vector<1x128xf32> to vector<8x128xf32>
    %15 = arith.subf %9, %14 : vector<8x128xf32>
    %16 = arith.mulf %15, %15 : vector<8x128xf32>
    %cst_7 = arith.constant dense<0.000000e+00> : vector<128xf32>
    %17 = vector.multi_reduction <add>, %16, %cst_7 [0] : vector<8x128xf32> to vector<128xf32>
    %18 = vector.shape_cast %17 : vector<128xf32> to vector<1x128xf32>
    %cst_8 = arith.constant 8.000000e+00 : f32
    %19 = vector.broadcast %cst_8 : f32 to vector<1x128xf32>
    %20 = arith.divf %18, %19 : vector<1x128xf32>
    %cst_9 = arith.constant 9.99999974E-6 : f32
    %21 = vector.broadcast %cst_9 : f32 to vector<1x128xf32>
    %22 = arith.addf %20, %21 : vector<1x128xf32>
    %23 = math.rsqrt %22 : vector<1x128xf32>
    %24 = arith.mulf %1, %23 : vector<1x128xf32>
    %25 = vector.broadcast %24 : vector<1x128xf32> to vector<8x128xf32>
    %26 = arith.mulf %15, %25 : vector<8x128xf32>
    %27 = vector.broadcast %2 : vector<1x128xf32> to vector<8x128xf32>
    %28 = arith.addf %26, %27 : vector<8x128xf32>
    %cst_10 = arith.constant dense<0.000000e+00> : vector<8x128xf32>
    %29 = tpu.matmul %28, %6, %cst_10 {dimension_numbers = #tpu.dot_dimension_numbers<[1], [0], [0], [1], [0, 0, 1, 1], [], []>} : vector<8x128xf32>, vector<128x128xf32>, vector<8x128xf32> -> vector<8x128xf32>
    %30 = vector.broadcast %3 : vector<1x128xf32> to vector<8x128xf32>
    %31 = arith.addf %29, %30 : vector<8x128xf32>
    %cst_11 = arith.constant 0.000000e+00 : f32
    %32 = vector.broadcast %cst_11 : f32 to vector<8x128xf32>
    %33 = arith.maximumf %31, %32 : vector<8x128xf32>
    %cst_12 = arith.constant dense<0.000000e+00> : vector<8x128xf32>
    %34 = tpu.matmul %33, %7, %cst_12 {dimension_numbers = #tpu.dot_dimension_numbers<[1], [0], [0], [1], [0, 0, 1, 1], [], []>} : vector<8x128xf32>, vector<128x128xf32>, vector<8x128xf32> -> vector<8x128xf32>
    %35 = vector.broadcast %4 : vector<1x128xf32> to vector<8x128xf32>
    %36 = arith.addf %34, %35 : vector<8x128xf32>
    %cst_13 = arith.constant 0.000000e+00 : f32
    %37 = vector.broadcast %cst_13 : f32 to vector<8x128xf32>
    %38 = arith.maximumf %36, %37 : vector<8x128xf32>
    %cst_14 = arith.constant dense<0.000000e+00> : vector<8x128xf32>
    %39 = tpu.matmul %38, %8, %cst_14 {dimension_numbers = #tpu.dot_dimension_numbers<[1], [0], [0], [1], [0, 0, 1, 1], [], []>} : vector<8x128xf32>, vector<128x128xf32>, vector<8x128xf32> -> vector<8x128xf32>
    %40 = vector.broadcast %5 : vector<1x128xf32> to vector<8x128xf32>
    %41 = arith.addf %39, %40 : vector<8x128xf32>
    %42 = tpu.iota {dimensions = array<i32: 1>} : vector<8x128xi32>
    %c2_i32 = arith.constant 2 : i32
    %43 = vector.broadcast %c2_i32 : i32 to vector<8x128xi32>
    %44 = arith.cmpi slt, %42, %43 : vector<8x128xi32>
    %cst_15 = arith.constant -1.000000e+30 : f32
    %45 = vector.broadcast %cst_15 : f32 to vector<8x128xf32>
    %46 = arith.select %44, %41, %45 : vector<8x128xi1>, vector<8x128xf32>
    %cst_16 = arith.constant dense<0xFF800000> : vector<8xf32>
    %47 = vector.multi_reduction <maximumf>, %46, %cst_16 [1] : vector<8x128xf32> to vector<8xf32>
    %48 = vector.shape_cast %47 : vector<8xf32> to vector<8x1xf32>
    %49 = vector.broadcast %48 : vector<8x1xf32> to vector<8x128xf32>
    %50 = arith.subf %46, %49 : vector<8x128xf32>
    %51 = math.exp %50 : vector<8x128xf32>
    %cst_17 = arith.constant dense<0.000000e+00> : vector<8xf32>
    %52 = vector.multi_reduction <add>, %51, %cst_17 [1] : vector<8x128xf32> to vector<8xf32>
    %53 = vector.shape_cast %52 : vector<8xf32> to vector<8x1xf32>
    %54 = tpu.reciprocal %53 {approx = true} : vector<8x1xf32> -> vector<8x1xf32>
    %55 = arith.mulf %53, %54 : vector<8x1xf32>
    %cst_18 = arith.constant 2.000000e+00 : f32
    %56 = vector.broadcast %cst_18 : f32 to vector<8x1xf32>
    %57 = arith.subf %56, %55 : vector<8x1xf32>
    %58 = arith.mulf %54, %57 : vector<8x1xf32>
    %59 = vector.broadcast %58 : vector<8x1xf32> to vector<8x128xf32>
    %60 = arith.mulf %51, %59 : vector<8x128xf32>
    %c0_19 = arith.constant 0 : index
    %c0_20 = arith.constant 0 : index
    %61 = vector.load %arg2[%c0_19, %c0_20] : memref<8x128xf32, #tpu.memory_space<vmem>>, vector<8x128xf32>
    tpu.vector_store %arg2[%c0_19, %c0_20], %60 {strides = array<i32>} : memref<8x128xf32, #tpu.memory_space<vmem>>, vector<8x128xf32>,
    return
  }
}

</mosaic_0001>

<llo_original>
// kernel: _lambda_.1
$region0: #{_lambda_.1}
  #allocation0 [shape = 'u32[]', space=smem, size = 0x4, offset = 0x4, fixed_abs, tag = 'smem constant byte address 0x4 - core index']
  #allocation1 [shape = 'u32[144,128]{1,0:T(1,128)}', space=vmem, size = 0x12000, scoped, tag = 'internal scratch']
  %s0 = inlined_call_operand.vmem [shape: f32[8,128], index: 0, kind: input, shape index: {}]
  %s1 = inlined_call_operand.vmem [shape: f32[392,128], index: 1, kind: input, shape index: {}]
  %s2 = inlined_call_operand.vmem [shape: f32[8,128], index: 2, kind: output, shape index: {}]
  %s3 = sld [smem:[#allocation0]]
  $region18: #{_lambda_.1} parent=0
    _
  %s5 = ssub.s32 1, %s3
  %s6 = scalar_select 0, %s5, %s3
  // Predicated region
  $region2: #{_lambda_.1} parent=0 // pred_check
    _
  $region3: #{_lambda_.1} parent=0 // pred_check_branch
    %8 = sbr.rel (0) target = $region5
  $region4: #{_lambda_.1} parent=0 // pred_region
    _
  $region5: #{_lambda_.1} parent=0 // pred_fallthru
    _
  // Predicated region
  $region6: #{_lambda_.1} parent=0 // pred_check
    _
  $region7: #{_lambda_.1} parent=0 // pred_check_branch
    %10 = sbr.rel (0) target = $region9
  $region8: #{_lambda_.1} parent=0 // pred_region
    _
  $region9: #{_lambda_.1} parent=0 // pred_fallthru
    _
  %v11 = vld [vmem:[%s1] sm:$0xff]
  %v12 = vld [vmem:[%s1 + $0x8] sm:$0xff]
  %v13 = vld [vmem:[%s1 + $0x10] sm:$0xff]
  %v14 = vld [vmem:[%s1 + $0x18] sm:$0xff]
  %v15 = vld [vmem:[%s1 + $0x20] sm:$0xff]
  %v16 = vld [vmem:[%s1 + $0x28] sm:$0xff]
  %v17 = vld [vmem:[%s1 + $0x30] sm:$0xff]
  %v18 = vld [vmem:[%s1 + $0x38] sm:$0xff]
  %v19 = vld [vmem:[%s1 + $0x40] sm:$0xff]
  %v20 = vld [vmem:[%s1 + $0x48] sm:$0xff]
  %v21 = vld [vmem:[%s1 + $0x50] sm:$0xff]
  %v22 = vld [vmem:[%s1 + $0x58] sm:$0xff]
  %v23 = vld [vmem:[%s1 + $0x60] sm:$0xff]
  %v24 = vld [vmem:[%s1 + $0x68] sm:$0xff]
  %v25 = vld [vmem:[%s1 + $0x70] sm:$0xff]
  %v26 = vld [vmem:[%s1 + $0x78] sm:$0xff]
  %v27 = vld [vmem:[%s1 + $0x80] sm:$0xff]
  %v28 = vld [vmem:[%s1 + $0x88] sm:$0xff]
  %v29 = vld [vmem:[%s1 + $0x90] sm:$0xff]
  %v30 = vld [vmem:[%s1 + $0x98] sm:$0xff]
  %v31 = vld [vmem:[%s1 + $0xa0] sm:$0xff]
  %v32 = vld [vmem:[%s1 + $0xa8] sm:$0xff]
  %v33 = vld [vmem:[%s1 + $0xb0] sm:$0xff]
  %v34 = vld [vmem:[%s1 + $0xb8] sm:$0xff]
  %v35 = vld [vmem:[%s1 + $0xc0] sm:$0xff]
  %v36 = vld [vmem:[%s1 + $0xc8] sm:$0xff]
  %v37 = vld [vmem:[%s1 + $0xd0] sm:$0xff]
  %v38 = vld [vmem:[%s1 + $0xd8] sm:$0xff]
  %v39 = vld [vmem:[%s1 + $0xe0] sm:$0xff]
  %v40 = vld [vmem:[%s1 + $0xe8] sm:$0xff]
  %v41 = vld [vmem:[%s1 + $0xf0] sm:$0xff]
  %v42 = vld [vmem:[%s1 + $0xf8] sm:$0xff]
  %v43 = vld [vmem:[%s1 + $0x100] sm:$0xff]
  %v44 = vld [vmem:[%s1 + $0x108] sm:$0xff]
  %v45 = vld [vmem:[%s1 + $0x110] sm:$0xff]
  %v46 = vld [vmem:[%s1 + $0x118] sm:$0xff]
  %v47 = vld [vmem:[%s1 + $0x120] sm:$0xff]
  %v48 = vld [vmem:[%s1 + $0x128] sm:$0xff]
  %v49 = vld [vmem:[%s1 + $0x130] sm:$0xff]
  %v50 = vld [vmem:[%s1 + $0x138] sm:$0xff]
  %v51 = vld [vmem:[%s1 + $0x140] sm:$0xff]
  %v52 = vld [vmem:[%s1 + $0x148] sm:$0xff]
  %v53 = vld [vmem:[%s1 + $0x150] sm:$0xff]
  %v54 = vld [vmem:[%s1 + $0x158] sm:$0xff]
  %v55 = vld [vmem:[%s1 + $0x160] sm:$0xff]
  %v56 = vld [vmem:[%s1 + $0x168] sm:$0xff]
  %v57 = vld [vmem:[%s1 + $0x170] sm:$0xff]
  %v58 = vld [vmem:[%s1 + $0x178] sm:$0xff]
  %v59 = vld [vmem:[%s1 + $0x180] sm:$0xff]
  %v60 = vld [vmem:[%s0] sm:$0xff]
  %v61 = vrot.slane %v60, 4
  %v62 = vadd.f32 %v60, %v61
  %v63 = vrot.slane %v62, 2
  %v64 = vadd.f32 %v62, %v63
  %v65 = vrot.slane %v64, 1
  %v66 = vadd.f32 %v64, %v65
  %v67 = vrcp.pop 8.0
  %v68 = vmul.f32 %v66, %v67
  %v69 = vsub.f32 %v60, %v68
  %v70 = vmul.f32 %v69, %v69
  %v71 = vrot.slane %v70, 4
  %v72 = vadd.f32 %v70, %v71
  %v73 = vrot.slane %v72, 2
  %v74 = vadd.f32 %v72, %v73
  %v75 = vrot.slane %v74, 1
  %v76 = vadd.f32 %v74, %v75
  %v77 = vmul.f32 %v76, %v67
  %v78 = vadd.f32 %v77, 1e-05
  %v79 = vrsqrt.pop %v78
  %v80 = vmul.f32 %v11, %v79
  %v81 = vlaneseq
  %v82 = vshrl.u32 %v81, 7
  %v83 = vsub.s32 0, %v82
  %v84 = vrot.slane %v80, %v83
  %v85 = vmul.f32 %v69, %v84
  %v86 = vlaneseq
  %v87 = vshrl.u32 %v86, 7
  %v88 = vsub.s32 1, %v87
  %v89 = vrot.slane %v11, %v88
  %v90 = vadd.f32 %v85, %v89
  %v91 = vlaneseq
  %v92 = vshrl.u32 %v91, 7
  %v93 = vsub.s32 2, %v92
  %v94 = vrot.slane %v11, %v93
  %95 = vmatprep.subr.mxu0 0.0
  %96 = vmatpush1.msra.mxu0 %v27
  %97 = vmatprep.subr.mxu0 0.0
  %98 = vmatpush1.msra.mxu0 %v26
  %99 = vmatprep.subr.mxu0 0.0
  %100 = vmatpush1.msra.mxu0 %v25
  %101 = vmatprep.subr.mxu0 0.0
  %102 = vmatpush1.msra.mxu0 %v24
  %103 = vmatprep.subr.mxu0 0.0
  %104 = vmatpush1.msra.mxu0 %v23
  %105 = vmatprep.subr.mxu0 0.0
  %106 = vmatpush1.msra.mxu0 %v22
  %107 = vmatprep.subr.mxu0 0.0
  %108 = vmatpush1.msra.mxu0 %v21
  %109 = vmatprep.subr.mxu0 0.0
  %110 = vmatpush1.msra.mxu0 %v20
  %111 = vmatprep.subr.mxu0 0.0
  %112 = vmatpush1.msra.mxu0 %v19
  %113 = vmatprep.subr.mxu0 0.0
  %114 = vmatpush1.msra.mxu0 %v18
  %115 = vmatprep.subr.mxu0 0.0
  %116 = vmatpush1.msra.mxu0 %v17
  %117 = vmatprep.subr.mxu0 0.0
  %118 = vmatpush1.msra.mxu0 %v16
  %119 = vmatprep.subr.mxu0 0.0
  %120 = vmatpush1.msra.mxu0 %v15
  %121 = vmatprep.subr.mxu0 0.0
  %122 = vmatpush1.msra.mxu0 %v14
  %123 = vmatprep.subr.mxu0 0.0
  %124 = vmatpush1.msra.mxu0 %v13
  %125 = vmatprep.subr.mxu0 0.0
  %126 = vmatpush1.msra.mxu0 %v12
  %127 = vmatprep.subr.mxu0 0.0
  %128 = vmatpush2.msra.mxu0 0.0
  %129 = vmatprep.subr.mxu0 0.0
  %130 = vmatpush2.msra.mxu0 0.0
  %131 = vmatprep.subr.mxu0 0.0
  %132 = vmatpush2.msra.mxu0 0.0
  %133 = vmatprep.subr.mxu0 0.0
  %134 = vmatpush2.msra.mxu0 0.0
  %135 = vmatprep.subr.mxu0 0.0
  %136 = vmatpush2.msra.mxu0 0.0
  %137 = vmatprep.subr.mxu0 0.0
  %138 = vmatpush2.msra.mxu0 0.0
  %139 = vmatprep.subr.mxu0 0.0
  %140 = vmatpush2.msra.mxu0 0.0
  %141 = vmatprep.subr.mxu0 0.0
  %142 = vmatpush2.msra.mxu0 0.0
  %143 = vmatprep.subr.mxu0 0.0
  %144 = vmatpush2.msra.mxu0 0.0
  %145 = vmatprep.subr.mxu0 0.0
  %146 = vmatpush2.msra.mxu0 0.0
  %147 = vmatprep.subr.mxu0 0.0
  %148 = vmatpush2.msra.mxu0 0.0
  %149 = vmatprep.subr.mxu0 0.0
  %150 = vmatpush2.msra.mxu0 0.0
  %151 = vmatprep.subr.mxu0 0.0
  %152 = vmatpush2.msra.mxu0 0.0
  %153 = vmatprep.subr.mxu0 0.0
  %154 = vmatpush2.msra.mxu0 0.0
  %155 = vmatprep.subr.mxu0 0.0
  %156 = vmatpush2.msra.mxu0 0.0
  %157 = vmatprep.subr.mxu0 0.0
  %158 = vmatpush2.msra.mxu0 0.0
  %159 = vmatprep.mubr.f32.mxu0 0.0
  %160 = vmatmul.mubr.f32.gmra.mxu0 %v90
  %v161 = vpop.f32.mrf.mxu0
  %v162 = vadd.f32 %v94, %v161
  %v163 = vpop.f32.mrf.mxu0
  %164 = vdwg.mxu0
  %v165 = vmax.f32 %v162, 0.0
  %v166 = vlaneseq
  %v167 = vshrl.u32 %v166, 7
  %v168 = vsub.s32 3, %v167
  %v169 = vrot.slane %v11, %v168
  %170 = vmatprep.subr.mxu0 0.0
  %171 = vmatpush1.msra.mxu0 %v43
  %172 = vmatprep.subr.mxu0 0.0
  %173 = vmatpush1.msra.mxu0 %v42
  %174 = vmatprep.subr.mxu0 0.0
  %175 = vmatpush1.msra.mxu0 %v41
  %176 = vmatprep.subr.mxu0 0.0
  %177 = vmatpush1.msra.mxu0 %v40
  %178 = vmatprep.subr.mxu0 0.0
  %179 = vmatpush1.msra.mxu0 %v39
  %180 = vmatprep.subr.mxu0 0.0
  %181 = vmatpush1.msra.mxu0 %v38
  %182 = vmatprep.subr.mxu0 0.0
  %183 = vmatpush1.msra.mxu0 %v37
  %184 = vmatprep.subr.mxu0 0.0
  %185 = vmatpush1.msra.mxu0 %v36
  %186 = vmatprep.subr.mxu0 0.0
  %187 = vmatpush1.msra.mxu0 %v35
  %188 = vmatprep.subr.mxu0 0.0
  %189 = vmatpush1.msra.mxu0 %v34
  %190 = vmatprep.subr.mxu0 0.0
  %191 = vmatpush1.msra.mxu0 %v33
  %192 = vmatprep.subr.mxu0 0.0
  %193 = vmatpush1.msra.mxu0 %v32
  %194 = vmatprep.subr.mxu0 0.0
  %195 = vmatpush1.msra.mxu0 %v31
  %196 = vmatprep.subr.mxu0 0.0
  %197 = vmatpush1.msra.mxu0 %v30
  %198 = vmatprep.subr.mxu0 0.0
  %199 = vmatpush1.msra.mxu0 %v29
  %200 = vmatprep.subr.mxu0 0.0
  %201 = vmatpush1.msra.mxu0 %v28
  %202 = vmatprep.subr.mxu0 0.0
  %203 = vmatpush2.msra.mxu0 0.0
  %204 = vmatprep.subr.mxu0 0.0
  %205 = vmatpush2.msra.mxu0 0.0
  %206 = vmatprep.subr.mxu0 0.0
  %207 = vmatpush2.msra.mxu0 0.0
  %208 = vmatprep.subr.mxu0 0.0
  %209 = vmatpush2.msra.mxu0 0.0
  %210 = vmatprep.subr.mxu0 0.0
  %211 = vmatpush2.msra.mxu0 0.0
  %212 = vmatprep.subr.mxu0 0.0
  %213 = vmatpush2.msra.mxu0 0.0
  %214 = vmatprep.subr.mxu0 0.0
  %215 = vmatpush2.msra.mxu0 0.0
  %216 = vmatprep.subr.mxu0 0.0
  %217 = vmatpush2.msra.mxu0 0.0
  %218 = vmatprep.subr.mxu0 0.0
  %219 = vmatpush2.msra.mxu0 0.0
  %220 = vmatprep.subr.mxu0 0.0
  %221 = vmatpush2.msra.mxu0 0.0
  %222 = vmatprep.subr.mxu0 0.0
  %223 = vmatpush2.msra.mxu0 0.0
  %224 = vmatprep.subr.mxu0 0.0
  %225 = vmatpush2.msra.mxu0 0.0
  %226 = vmatprep.subr.mxu0 0.0
  %227 = vmatpush2.msra.mxu0 0.0
  %228 = vmatprep.subr.mxu0 0.0
  %229 = vmatpush2.msra.mxu0 0.0
  %230 = vmatprep.subr.mxu0 0.0
  %231 = vmatpush2.msra.mxu0 0.0
  %232 = vmatprep.subr.mxu0 0.0
  %233 = vmatpush2.msra.mxu0 0.0
  %234 = vmatprep.mubr.f32.mxu0 0.0
  %235 = vmatmul.mubr.f32.gmra.mxu0 %v165
  %v236 = vpop.f32.mrf.mxu0
  %v237 = vadd.f32 %v169, %v236
  %v238 = vpop.f32.mrf.mxu0
  %239 = vdwg.mxu0
  %v240 = vmax.f32 %v237, 0.0
  %v241 = vlaneseq
  %v242 = vshrl.u32 %v241, 7
  %v243 = vsub.s32 4, %v242
  %v244 = vrot.slane %v11, %v243
  %245 = vmatprep.subr.mxu0 0.0
  %246 = vmatpush1.msra.mxu0 %v59
  %247 = vmatprep.subr.mxu0 0.0
  %248 = vmatpush1.msra.mxu0 %v58
  %249 = vmatprep.subr.mxu0 0.0
  %250 = vmatpush1.msra.mxu0 %v57
  %251 = vmatprep.subr.mxu0 0.0
  %252 = vmatpush1.msra.mxu0 %v56
  %253 = vmatprep.subr.mxu0 0.0
  %254 = vmatpush1.msra.mxu0 %v55
  %255 = vmatprep.subr.mxu0 0.0
  %256 = vmatpush1.msra.mxu0 %v54
  %257 = vmatprep.subr.mxu0 0.0
  %258 = vmatpush1.msra.mxu0 %v53
  %259 = vmatprep.subr.mxu0 0.0
  %260 = vmatpush1.msra.mxu0 %v52
  %261 = vmatprep.subr.mxu0 0.0
  %262 = vmatpush1.msra.mxu0 %v51
  %263 = vmatprep.subr.mxu0 0.0
  %264 = vmatpush1.msra.mxu0 %v50
  %265 = vmatprep.subr.mxu0 0.0
  %266 = vmatpush1.msra.mxu0 %v49
  %267 = vmatprep.subr.mxu0 0.0
  %268 = vmatpush1.msra.mxu0 %v48
  %269 = vmatprep.subr.mxu0 0.0
  %270 = vmatpush1.msra.mxu0 %v47
  %271 = vmatprep.subr.mxu0 0.0
  %272 = vmatpush1.msra.mxu0 %v46
  %273 = vmatprep.subr.mxu0 0.0
  %274 = vmatpush1.msra.mxu0 %v45
  %275 = vmatprep.subr.mxu0 0.0
  %276 = vmatpush1.msra.mxu0 %v44
  %277 = vmatprep.subr.mxu0 0.0
  %278 = vmatpush2.msra.mxu0 0.0
  %279 = vmatprep.subr.mxu0 0.0
  %280 = vmatpush2.msra.mxu0 0.0
  %281 = vmatprep.subr.mxu0 0.0
  %282 = vmatpush2.msra.mxu0 0.0
  %283 = vmatprep.subr.mxu0 0.0
  %284 = vmatpush2.msra.mxu0 0.0
  %285 = vmatprep.subr.mxu0 0.0
  %286 = vmatpush2.msra.mxu0 0.0
  %287 = vmatprep.subr.mxu0 0.0
  %288 = vmatpush2.msra.mxu0 0.0
  %289 = vmatprep.subr.mxu0 0.0
  %290 = vmatpush2.msra.mxu0 0.0
  %291 = vmatprep.subr.mxu0 0.0
  %292 = vmatpush2.msra.mxu0 0.0
  %293 = vmatprep.subr.mxu0 0.0
  %294 = vmatpush2.msra.mxu0 0.0
  %295 = vmatprep.subr.mxu0 0.0
  %296 = vmatpush2.msra.mxu0 0.0
  %297 = vmatprep.subr.mxu0 0.0
  %298 = vmatpush2.msra.mxu0 0.0
  %299 = vmatprep.subr.mxu0 0.0
  %300 = vmatpush2.msra.mxu0 0.0
  %301 = vmatprep.subr.mxu0 0.0
  %302 = vmatpush2.msra.mxu0 0.0
  %303 = vmatprep.subr.mxu0 0.0
  %304 = vmatpush2.msra.mxu0 0.0
  %305 = vmatprep.subr.mxu0 0.0
  %306 = vmatpush2.msra.mxu0 0.0
  %307 = vmatprep.subr.mxu0 0.0
  %308 = vmatpush2.msra.mxu0 0.0
  %309 = vmatprep.mubr.f32.mxu0 0.0
  %310 = vmatmul.mubr.f32.gmra.mxu0 %v240
  %v311 = vpop.f32.mrf.mxu0
  %v312 = vadd.f32 %v244, %v311
  %v313 = vpop.f32.mrf.mxu0
  %314 = vdwg.mxu0
  %v315 = vlaneseq
  %v316 = vand.u32 %v315, 127
  %vm317 = vcmp.lt.s32.totalorder %v316, 2
  %v318 = vsel %vm317, %v312, -1e+30
  %319 = vmax.xlane.f32.xlu0 %v318
  %v320 = vpop.xlane.xlu0 %319
  %v321 = vsub.f32 %v318, %v320
  %v322 = vmul.f32 %v321, 1.442695
  %v323 = vpow.pop %v322
  %324 = vadd.xlane.f32.xlu0 %v323
  %v325 = vpop.xlane.xlu0 %324
  %v326 = vrcp.pop %v325
  %v327 = vmul.f32 %v325, %v326
  %v328 = vsub.f32 2.0, %v327
  %v329 = vmul.f32 %v326, %v328
  %v330 = vmul.f32 %v323, %v329
  %331 = vst [vmem:[%s2] sm:$0xff] %v330
  // Predicated region
  $region10: #{_lambda_.1} parent=0 // pred_check
    _
  $region11: #{_lambda_.1} parent=0 // pred_check_branch
    %333 = sbr.rel (0) target = $region13
  $region12: #{_lambda_.1} parent=0 // pred_region
    _
  $region13: #{_lambda_.1} parent=0 // pred_fallthru
    _
  // Predicated region
  $region14: #{_lambda_.1} parent=0 // pred_check
    _
  $region15: #{_lambda_.1} parent=0 // pred_check_branch
    %335 = sbr.rel (0) target = $region17
  $region16: #{_lambda_.1} parent=0 // pred_region
    _
  $region17: #{_lambda_.1} parent=0 // pred_fallthru
    _

</llo_original>
